<compile_context>
chip_gen: v7x
topology: tpu7x:2x2x1
jax: 0.10.0
libtpu: 0.0.40
codegen_flags: <defaults>
</compile_context>

<pallas_src>
import math

import jax
import jax.numpy as jnp
from jax.experimental import pallas as pl
from jax.experimental.pallas import tpu as pltpu


def _choose_q_tile(q_len: int) -> int:
    """Largest MXU/vreg-friendly Q tile that evenly divides q_len."""
    for t in (512, 256, 128):
        if q_len % t == 0:
            return t
    return q_len  # small / irregular Q: single block covering everything


def _make_attention_kernel(*, per_query_vl: bool, masked: bool,
                           with_weights: bool, approx_recip: bool):
    """Kernel signature: kernel(vl_ref, q_ref, k_ref, v_ref, o_ref[, w_ref]).

    vl_ref is either an SMEM (B,) scalar-prefetch ref (per-batch lengths) or
    a VMEM (1, TQ, 1) ref (per-query lengths)."""

    def kernel(vl_ref, q_ref, k_ref, v_ref, o_ref, *w_refs):
        q = q_ref[0]                       # (TQ, D)
        k = k_ref[0]                       # (K,  D)
        v = v_ref[0]                       # (K,  V)
        d = q.shape[-1]

        # Fold 1/sqrt(d) into q: scales TQ*D elements instead of TQ*K scores.
        q = q * jnp.asarray(1.0 / math.sqrt(d), dtype=q.dtype)

        # scores = q @ k^T, contracting on d directly (no transpose in front
        # of the MXU), f32 accumulation.
        scores = jax.lax.dot_general(
            q, k, dimension_numbers=(((1,), (1,)), ((), ())),
            preferred_element_type=jnp.float32)            # (TQ, K) f32

        if masked:
            kidx = jax.lax.broadcasted_iota(jnp.int32, scores.shape, 1)
            if per_query_vl:
                vlen = vl_ref[0]                           # (TQ, 1) int32 VMEM
            else:
                vlen = vl_ref[pl.program_id(0)]            # scalar int32 SMEM
            scores = jnp.where(kidx < vlen, scores, jnp.float32(-1e6))

        # Numerically-stable softmax over the key axis; reciprocal on the EUP.
        m = jnp.max(scores, axis=-1, keepdims=True)
        e = jnp.exp(scores - m)
        s = jnp.sum(e, axis=-1, keepdims=True)
        w = e * pl.reciprocal(s, approx=approx_recip)      # (TQ, K) f32

        # Dropout is the identity in eval mode (see TODO at top of file).
        out = jnp.dot(w.astype(v.dtype), v, preferred_element_type=jnp.float32)

        o_ref[0] = out.astype(o_ref.dtype)
        if with_weights:
            w_refs[0][0] = w.astype(w_refs[0].dtype)

    return kernel


def dot_product_attention(queries, keys, values, valid_lens=None, *,
                          return_attention_weights=True,
                          approx_reciprocal=True,
                          vmem_limit_bytes=None):
    """Pallas implementation of DotProductAttention.forward (eval mode).

    Returns (output, attention_weights) or just output if
    return_attention_weights=False.
      output:            (B, Q, V)  in queries.dtype
      attention_weights: (B, Q, K)  in queries.dtype
    """
    B, Q, D = queries.shape
    _, K, _ = keys.shape
    _, _, V = values.shape

    tq = _choose_q_tile(Q)
    grid = (B, Q // tq)

    per_query = valid_lens is not None and valid_lens.ndim == 2
    masked = valid_lens is not None

    kernel = _make_attention_kernel(per_query_vl=per_query, masked=masked,
                                    with_weights=return_attention_weights,
                                    approx_recip=approx_reciprocal)

    w_dtype = queries.dtype  # emit weights in input dtype (bf16-friendly)
    if return_attention_weights:
        out_shape = (jax.ShapeDtypeStruct((B, Q, V), queries.dtype),
                     jax.ShapeDtypeStruct((B, Q, K), w_dtype))
    else:
        out_shape = jax.ShapeDtypeStruct((B, Q, V), queries.dtype)

    cp_kwargs = dict(dimension_semantics=("parallel", "parallel"))
    if vmem_limit_bytes is not None:
        # e.g. pass 96 << 20 on v6e for very large (TQ, K) blocks; default
        # scoped limits are kept otherwise (v7x only has 64 MiB physical).
        cp_kwargs["vmem_limit_bytes"] = int(vmem_limit_bytes)
    compiler_params = pltpu.CompilerParams(**cp_kwargs)

    if per_query:
        # Genuinely per-query lengths: (B, Q, 1) int32 VMEM operand.
        vl = valid_lens.astype(jnp.int32).reshape(B, Q, 1)
        in_specs = [
            pl.BlockSpec((1, tq, 1), lambda b, qi: (b, qi, 0)),   # valid lens
            pl.BlockSpec((1, tq, D), lambda b, qi: (b, qi, 0)),   # queries
            pl.BlockSpec((1, K, D), lambda b, qi: (b, 0, 0)),     # keys
            pl.BlockSpec((1, K, V), lambda b, qi: (b, 0, 0)),     # values
        ]
        o_spec = pl.BlockSpec((1, tq, V), lambda b, qi: (b, qi, 0))
        w_spec = pl.BlockSpec((1, tq, K), lambda b, qi: (b, qi, 0))
        grid_spec = pltpu.PrefetchScalarGridSpec(
            num_scalar_prefetch=0, grid=grid, in_specs=in_specs,
            out_specs=[o_spec, w_spec] if return_attention_weights else o_spec)
    else:
        # Per-batch lengths (or no masking): (B,) int32 scalar-prefetch array
        # lives in SMEM and is read as a scalar -> no per-step VMEM DMA.
        if valid_lens is None:
            vl = jnp.full((B,), K, dtype=jnp.int32)
        else:
            vl = valid_lens.astype(jnp.int32).reshape(B)
        in_specs = [
            pl.BlockSpec((1, tq, D), lambda b, qi, vl_ref: (b, qi, 0)),
            pl.BlockSpec((1, K, D), lambda b, qi, vl_ref: (b, 0, 0)),
            pl.BlockSpec((1, K, V), lambda b, qi, vl_ref: (b, 0, 0)),
        ]
        o_spec = pl.BlockSpec((1, tq, V), lambda b, qi, vl_ref: (b, qi, 0))
        w_spec = pl.BlockSpec((1, tq, K), lambda b, qi, vl_ref: (b, qi, 0))
        grid_spec = pltpu.PrefetchScalarGridSpec(
            num_scalar_prefetch=1, grid=grid, in_specs=in_specs,
            out_specs=[o_spec, w_spec] if return_attention_weights else o_spec)

    result = pl.pallas_call(
        kernel, out_shape=out_shape, grid_spec=grid_spec,
        compiler_params=compiler_params)(vl, queries, keys, values)

    if return_attention_weights:
        out, weights = result
        return out, weights
    return result


def _reference(queries, keys, values, valid_lens):
    d = queries.shape[-1]
    scores = jnp.einsum("bqd,bkd->bqk", queries, keys) / math.sqrt(d)
    B, Q, K = scores.shape
    if valid_lens is None:
        w = jax.nn.softmax(scores, axis=-1)
        return jnp.einsum("bqk,bkv->bqv", w, values), w
    if valid_lens.ndim == 1:
        vl = jnp.broadcast_to(valid_lens[:, None], (B, Q))
    else:
        vl = valid_lens
    mask = jnp.arange(K)[None, None, :] < vl[:, :, None]
    scores = jnp.where(mask, scores, -1e6)
    w = jax.nn.softmax(scores, axis=-1)
    return jnp.einsum("bqk,bkv->bqv", w, values), w


if __name__ == "__main__":
    key = jax.random.PRNGKey(0)
    k1, k2, k3, k4, k5, k6, k7 = jax.random.split(key, 7)

    # Tolerances account for the EUP approximate-reciprocal softmax denominator
    # and for folding 1/sqrt(d) into q before the matmul.
    ATOL = RTOL = 1e-2

    # --- Case 1: small shapes, per-batch (1-D) valid_lens -------------------
    B, Q, K, D, V = 2, 8, 8, 16, 16
    q1 = jax.random.normal(k1, (B, Q, D), dtype=jnp.float32)
    kk1 = jax.random.normal(k2, (B, K, D), dtype=jnp.float32)
    v1 = jax.random.normal(k3, (B, K, V), dtype=jnp.float32)
    vl1 = jnp.array([3, 6], dtype=jnp.int32)

    out1, w1 = dot_product_attention(q1, kk1, v1, vl1)
    out1 = jax.block_until_ready(out1)
    ref_o1, ref_w1 = _reference(q1, kk1, v1, vl1)
    assert jnp.allclose(out1, ref_o1, atol=ATOL, rtol=RTOL)
    assert jnp.allclose(w1, ref_w1, atol=ATOL, rtol=RTOL)

    # --- Case 2: Q-tiled grid (TQ=512, 2 tiles) + per-query (2-D) lens -------
    B2, Q2, K2, D2, V2 = 2, 1024, 128, 64, 64
    q2 = jax.random.normal(k4, (B2, Q2, D2), dtype=jnp.float32)
    kk2 = jax.random.normal(k5, (B2, K2, D2), dtype=jnp.float32)
    v2 = jax.random.normal(k6, (B2, K2, V2), dtype=jnp.float32)
    vl2 = jax.random.randint(k7, (B2, Q2), 1, K2 + 1, dtype=jnp.int32)

    out2, w2 = dot_product_attention(q2, kk2, v2, vl2)
    out2 = jax.block_until_ready(out2)
    ref_o2, ref_w2 = _reference(q2, kk2, v2, vl2)
    assert jnp.allclose(out2, ref_o2, atol=ATOL, rtol=RTOL)
    assert jnp.allclose(w2, ref_w2, atol=ATOL, rtol=RTOL)

    # --- Case 3: no masking, attention-weights output elided -----------------
    out3 = dot_product_attention(q1, kk1, v1, None,
                                 return_attention_weights=False)
    out3 = jax.block_until_ready(out3)
    ref_o3, _ = _reference(q1, kk1, v1, None)
    assert jnp.allclose(out3, ref_o3, atol=ATOL, rtol=RTOL)

    print("KERNEL_OK")
</pallas_src>

<mosaic_0001>
module attributes {stable_mosaic.version = 11 : i64} {
  func.func @kernel(%arg0: i32, %arg1: i32, %arg2: memref<2xi32, #tpu.memory_space<smem>>, %arg3: memref<1x8x16xf32, #tpu.memory_space<vmem>>, %arg4: memref<1x8x16xf32, #tpu.memory_space<vmem>>, %arg5: memref<1x8x16xf32, #tpu.memory_space<vmem>>, %arg6: memref<1x8x16xf32, #tpu.memory_space<vmem>>, %arg7: memref<1x8x8xf32, #tpu.memory_space<vmem>>) attributes {dimension_semantics = [#tpu.dimension_semantics<parallel>, #tpu.dimension_semantics<parallel>], iteration_bounds = array<i64: 2, 1>, scalar_prefetch = 1 : i64, scratch_operands = 0 : i64, tpu.core_type = #tpu.core_type<tc>, window_params = [{transform_indices = @transform_0, window_bounds = array<i64: 1, 8, 16>}, {transform_indices = @transform_1, window_bounds = array<i64: 1, 8, 16>}, {transform_indices = @transform_2, window_bounds = array<i64: 1, 8, 16>}, {transform_indices = @transform_3, window_bounds = array<i64: 1, 8, 16>}, {transform_indices = @transform_4, window_bounds = array<i64: 1, 8, 8>}]} {
    %c0 = arith.constant 0 : index
    %c0_0 = arith.constant 0 : index
    %c0_1 = arith.constant 0 : index
    %0 = vector.load %arg3[%c0, %c0_0, %c0_1] : memref<1x8x16xf32, #tpu.memory_space<vmem>>, vector<1x8x16xf32>
    %1 = vector.shape_cast %0 : vector<1x8x16xf32> to vector<8x16xf32>
    %c0_2 = arith.constant 0 : index
    %c0_3 = arith.constant 0 : index
    %c0_4 = arith.constant 0 : index
    %2 = vector.load %arg4[%c0_2, %c0_3, %c0_4] : memref<1x8x16xf32, #tpu.memory_space<vmem>>, vector<1x8x16xf32>
    %3 = vector.shape_cast %2 : vector<1x8x16xf32> to vector<8x16xf32>
    %c0_5 = arith.constant 0 : index
    %c0_6 = arith.constant 0 : index
    %c0_7 = arith.constant 0 : index
    %4 = vector.load %arg5[%c0_5, %c0_6, %c0_7] : memref<1x8x16xf32, #tpu.memory_space<vmem>>, vector<1x8x16xf32>
    %5 = vector.shape_cast %4 : vector<1x8x16xf32> to vector<8x16xf32>
    %cst = arith.constant 2.500000e-01 : f32
    %6 = vector.broadcast %cst : f32 to vector<8x16xf32>
    %7 = arith.mulf %1, %6 : vector<8x16xf32>
    %cst_8 = arith.constant dense<0.000000e+00> : vector<8x8xf32>
    %8 = tpu.matmul %7, %3, %cst_8 {dimension_numbers = #tpu.dot_dimension_numbers<[1], [1], [0], [0], [0, 0, 1, 0], [], []>} : vector<8x16xf32>, vector<8x16xf32>, vector<8x8xf32> -> vector<8x8xf32>
    %9 = tpu.iota {dimensions = array<i32: 1>} : vector<8x8xi32>
    %10 = arith.index_cast %arg0 : i32 to index
    %11 = memref.load %arg2[%10] : memref<2xi32, #tpu.memory_space<smem>>
    %12 = vector.broadcast %11 : i32 to vector<8x8xi32>
    %13 = arith.cmpi slt, %9, %12 : vector<8x8xi32>
    %cst_9 = arith.constant -1.000000e+06 : f32
    %14 = vector.broadcast %cst_9 : f32 to vector<8x8xf32>
    %15 = arith.select %13, %8, %14 : vector<8x8xi1>, vector<8x8xf32>
    %cst_10 = arith.constant dense<0xFF800000> : vector<8xf32>
    %16 = vector.multi_reduction <maximumf>, %15, %cst_10 [1] : vector<8x8xf32> to vector<8xf32>
    %17 = vector.shape_cast %16 : vector<8xf32> to vector<8x1xf32>
    %18 = vector.broadcast %17 : vector<8x1xf32> to vector<8x8xf32>
    %19 = arith.subf %15, %18 : vector<8x8xf32>
    %20 = math.exp %19 : vector<8x8xf32>
    %cst_11 = arith.constant dense<0.000000e+00> : vector<8xf32>
    %21 = vector.multi_reduction <add>, %20, %cst_11 [1] : vector<8x8xf32> to vector<8xf32>
    %22 = vector.shape_cast %21 : vector<8xf32> to vector<8x1xf32>
    %23 = tpu.reciprocal %22 {approx = true} : vector<8x1xf32> -> vector<8x1xf32>
    %24 = vector.broadcast %23 : vector<8x1xf32> to vector<8x8xf32>
    %25 = arith.mulf %20, %24 : vector<8x8xf32>
    %cst_12 = arith.constant dense<0.000000e+00> : vector<8x16xf32>
    %26 = tpu.matmul %25, %5, %cst_12 {dimension_numbers = #tpu.dot_dimension_numbers<[1], [0], [0], [1], [0, 0, 1, 1], [], []>} : vector<8x8xf32>, vector<8x16xf32>, vector<8x16xf32> -> vector<8x16xf32>
    %c0_13 = arith.constant 0 : index
    %c0_14 = arith.constant 0 : index
    %c0_15 = arith.constant 0 : index
    %27 = vector.load %arg6[%c0_13, %c0_14, %c0_15] : memref<1x8x16xf32, #tpu.memory_space<vmem>>, vector<1x8x16xf32>
    %28 = vector.shape_cast %27 : vector<1x8x16xf32> to vector<8x16xf32>
    %29 = vector.shape_cast %26 : vector<8x16xf32> to vector<1x8x16xf32>
    tpu.vector_store %arg6[%c0_13, %c0_14, %c0_15], %29 {strides = array<i32>} : memref<1x8x16xf32, #tpu.memory_space<vmem>>, vector<1x8x16xf32>,
    %c0_16 = arith.constant 0 : index
    %c0_17 = arith.constant 0 : index
    %c0_18 = arith.constant 0 : index
    %30 = vector.load %arg7[%c0_16, %c0_17, %c0_18] : memref<1x8x8xf32, #tpu.memory_space<vmem>>, vector<1x8x8xf32>
    %31 = vector.shape_cast %30 : vector<1x8x8xf32> to vector<8x8xf32>
    %32 = vector.shape_cast %25 : vector<8x8xf32> to vector<1x8x8xf32>
    tpu.vector_store %arg7[%c0_16, %c0_17, %c0_18], %32 {strides = array<i32>} : memref<1x8x8xf32, #tpu.memory_space<vmem>>, vector<1x8x8xf32>,
    return
  }
  func.func @transform_0(%arg0: i32, %arg1: i32, %arg2: memref<2xi32, #tpu.memory_space<smem>>) -> (i32, i32, i32) {
    %c0_i32 = arith.constant 0 : i32
    %c0_i32_0 = arith.constant 0 : i32
    return %arg0, %arg1, %c0_i32 : i32, i32, i32
  }
  func.func @transform_1(%arg0: i32, %arg1: i32, %arg2: memref<2xi32, #tpu.memory_space<smem>>) -> (i32, i32, i32) {
    %c0_i32 = arith.constant 0 : i32
    %c0_i32_0 = arith.constant 0 : i32
    %c0_i32_1 = arith.constant 0 : i32
    return %arg0, %c0_i32, %c0_i32_0 : i32, i32, i32
  }
  func.func @transform_2(%arg0: i32, %arg1: i32, %arg2: memref<2xi32, #tpu.memory_space<smem>>) -> (i32, i32, i32) {
    %c0_i32 = arith.constant 0 : i32
    %c0_i32_0 = arith.constant 0 : i32
    %c0_i32_1 = arith.constant 0 : i32
    return %arg0, %c0_i32, %c0_i32_0 : i32, i32, i32
  }
  func.func @transform_3(%arg0: i32, %arg1: i32, %arg2: memref<2xi32, #tpu.memory_space<smem>>) -> (i32, i32, i32) {
    %c0_i32 = arith.constant 0 : i32
    %c0_i32_0 = arith.constant 0 : i32
    return %arg0, %arg1, %c0_i32 : i32, i32, i32
  }
  func.func @transform_4(%arg0: i32, %arg1: i32, %arg2: memref<2xi32, #tpu.memory_space<smem>>) -> (i32, i32, i32) {
    %c0_i32 = arith.constant 0 : i32
    %c0_i32_0 = arith.constant 0 : i32
    return %arg0, %arg1, %c0_i32 : i32, i32, i32
  }
}

</mosaic_0001>

<llo_original>
// kernel: tpu_custom_call.1
$region0: #{tpu_custom_call.1}
  #allocation0 [shape = 'u32[]', space=smem, size = 0x4, offset = 0x4, fixed_abs, tag = 'smem constant byte address 0x4 - core index']
  #allocation1 [shape = 'u32[144,128]{1,0:T(1,128)}', space=vmem, size = 0x12000, scoped, tag = 'internal scratch']
  #allocation2 [shape = 's32[1]{0}', space=sflag, size = 0x4, scoped, tag = 'scoped memory for tpu_custom_call.1']
  #allocation3 [shape = 'u8[512]{0}', space=smem, size = 0x200, scoped, tag = 'prefetched SMEM operand 0']
  %s0 = inlined_call_operand.hbm [shape: s32[2], index: 0, kind: input, shape index: {}]
  %s1 = inlined_call_operand.hbm [shape: f32[2,8,16], index: 1, kind: input, shape index: {}]
  %s2 = inlined_call_operand.hbm [shape: f32[2,8,16], index: 2, kind: input, shape index: {}]
  %s3 = inlined_call_operand.hbm [shape: f32[2,8,16], index: 3, kind: input, shape index: {}]
  %s4 = inlined_call_operand.hbm [shape: f32[2,8,16], index: 4, kind: output, shape index: {0}]
  %s5 = inlined_call_operand.hbm [shape: f32[2,8,8], index: 5, kind: output, shape index: {1}]
  %6 = xla_tuple %s4, %s5
  %s7 = sld [smem:[#allocation0]]
  $region65: #{tpu_custom_call.1} parent=0
    _
  %s9 = ssub.s32 1, %s7
  %s10 = scalar_select 0, %s9, %s7
  %12 = dma.hbm_to_smem %s0, 16, [#allocation3], [#allocation2]
  %13 = dma.done [#allocation2], 16
  %14 = sfence
  $region1: #{tpu_custom_call.1} parent=0
    #allocation4 [shape = 'u8[8192]{0}', space=vmem, size = 0x2000, scoped, tag = 'input window, operand 1']
    #allocation5 [shape = 's32[2]{0}', space=sflag, size = 0x8, scoped, tag = 'scoped memory for tpu_custom_call.1']
    #allocation6 [shape = 's32[2]{0}', space=sflag, size = 0x8, scoped, tag = 'scoped memory for tpu_custom_call.1']
    #allocation7 [shape = 'u8[8192]{0}', space=vmem, size = 0x2000, scoped, tag = 'input window, operand 2']
    #allocation8 [shape = 's32[2]{0}', space=sflag, size = 0x8, scoped, tag = 'scoped memory for tpu_custom_call.1']
    #allocation9 [shape = 'u8[8192]{0}', space=vmem, size = 0x2000, scoped, tag = 'input window, operand 3']
    #allocation10 [shape = 'u8[8192]{0}', space=vmem, size = 0x2000, scoped, tag = 'output window, operand 0']
    #allocation11 [shape = 'u8[8192]{0}', space=vmem, size = 0x2000, scoped, tag = 'output window, operand 1']
    #allocation12 [shape = 's32[2]{0}', space=sflag, size = 0x8, scoped, tag = 'scoped memory for tpu_custom_call.1']
    %15 = vsyncpa [#allocation5], 0
    %s16 = scalar_lea.sflag [#allocation5], 1
    %17 = vsyncpa %s16, 0
    %18 = vsyncpa [#allocation8], 0
    %s19 = scalar_lea.sflag [#allocation8], 1
    %20 = vsyncpa %s19, 0
    %21 = vsyncpa [#allocation6], 0
    %s22 = scalar_lea.sflag [#allocation6], 1
    %23 = vsyncpa %s22, 0
    %24 = vsyncpa [#allocation12], 0
    %s25 = scalar_lea.sflag [#allocation12], 1
    %26 = vsyncpa %s25, 0
    loop: start=0, step=1, limit=4
    $region2: #{tpu_custom_call.1} parent=1 // loop_pre_header
      _
    $region3: #{tpu_custom_call.1} parent=1 // loop_header
      %s28 = sphi 0, %s32
      %p29 = scmp.ge.s32.totalorder %s28, 4
      %s35 = sphi 0, %s47
      %s36 = sphi 0, %s43
      %s37 = sphi 0, %s35
      %s38 = sphi 0, %s36
      %s39 = sphi 0, %s37
      %s40 = sphi 0, %s38
      %s52 = sphi 0, %s54
      %s55 = sphi 0, %s52
      %s56 = sphi 0, %s55
      %s72 = sphi 0, %s56
      %s78 = sphi 0, %s80
      %s81 = sphi 0, %s78
      %s82 = sphi 0, %s81
      %s98 = sphi 0, %s82
      %s104 = sphi 0, %s106
      %s107 = sphi 0, %s104
      %s108 = sphi 0, %s107
      %s124 = sphi 0, %s108
      %s132 = sphi 0, %s134
      %s135 = sphi 0, %s132
      %s136 = sphi 0, %s135
      %s152 = sphi 0, %s136
      %s160 = sphi 0, %s162
      %s163 = sphi 0, %s160
      %s164 = sphi 0, %s163
      %s180 = sphi 0, %s164
    $region4: #{tpu_custom_call.1} parent=1 // loop_header_branch
      %31 = sbr.rel (%p29) target = $region8
    $region5: #{tpu_custom_call.1} parent=1 // loop_body
      %s33 = ssub.s32 %s28, 1
      %s34 = ssub.s32 %s28, 2
      %s41 = sadd.s32 1, %s36
      %p42 = scmp.ge.s32.totalorder %s41, 1
      %s43 = scalar_select %p42, 0, %s41
      %s44 = sadd.s32 1, %s35
      %s45 = scalar_select %p42, %s44, %s35
      %p46 = scmp.ge.s32.totalorder %s45, 2
      %s47 = scalar_select %p46, 0, %s45
      %s48 = ssub.s32 %s35, %s47
      %s49 = ssub.s32 %s36, %s43
      %s50 = sor.u32 %s48, %s49
      %p51 = scmp.eq.s32.totalorder %s50, 0
      %s53 = sadd.s32 %s52, 1
      %s54 = scalar_select %p51, %s52, %s53
      %p57 = pneg %p51
      %p58 = scmp.eq.s32.totalorder %s28, 1
      %p59 = por %p57, %p58
      %p60 = scmp.ne.s32.totalorder %s52, %s55
      %p61 = scmp.eq.s32.totalorder %s28, 0
      %p62 = por %p60, %p61
      %p63 = scmp.ne.s32.totalorder %s52, %s55
      %p64 = scmp.eq.s32.totalorder %s33, 1
      %p65 = por %p63, %p64
      %p66 = scmp.ne.s32.totalorder %s55, %s56
      %p67 = scmp.eq.s32.totalorder %s33, 0
      %p68 = por %p66, %p67
      %p69 = scmp.ne.s32.totalorder %s55, %s56
      %p70 = scmp.eq.s32.totalorder %s34, 1
      %p71 = por %p69, %p70
      %p73 = scmp.ne.s32.totalorder %s56, %s72
      %p74 = scmp.eq.s32.totalorder %s34, 0
      %p75 = por %p73, %p74
      %s76 = ssub.s32 %s35, %s47
      %p77 = scmp.eq.s32.totalorder %s76, 0
      %s79 = sadd.s32 %s78, 1
      %s80 = scalar_select %p77, %s78, %s79
      %p83 = pneg %p77
      %p84 = scmp.eq.s32.totalorder %s28, 1
      %p85 = por %p83, %p84
      %p86 = scmp.ne.s32.totalorder %s78, %s81
      %p87 = scmp.eq.s32.totalorder %s28, 0
      %p88 = por %p86, %p87
      %p89 = scmp.ne.s32.totalorder %s78, %s81
      %p90 = scmp.eq.s32.totalorder %s33, 1
      %p91 = por %p89, %p90
      %p92 = scmp.ne.s32.totalorder %s81, %s82
      %p93 = scmp.eq.s32.totalorder %s33, 0
      %p94 = por %p92, %p93
      %p95 = scmp.ne.s32.totalorder %s81, %s82
      %p96 = scmp.eq.s32.totalorder %s34, 1
      %p97 = por %p95, %p96
      %p99 = scmp.ne.s32.totalorder %s82, %s98
      %p100 = scmp.eq.s32.totalorder %s34, 0
      %p101 = por %p99, %p100
      %s102 = ssub.s32 %s35, %s47
      %p103 = scmp.eq.s32.totalorder %s102, 0
      %s105 = sadd.s32 %s104, 1
      %s106 = scalar_select %p103, %s104, %s105
      %p109 = pneg %p103
      %p110 = scmp.eq.s32.totalorder %s28, 1
      %p111 = por %p109, %p110
      %p112 = scmp.ne.s32.totalorder %s104, %s107
      %p113 = scmp.eq.s32.totalorder %s28, 0
      %p114 = por %p112, %p113
      %p115 = scmp.ne.s32.totalorder %s104, %s107
      %p116 = scmp.eq.s32.totalorder %s33, 1
      %p117 = por %p115, %p116
      %p118 = scmp.ne.s32.totalorder %s107, %s108
      %p119 = scmp.eq.s32.totalorder %s33, 0
      %p120 = por %p118, %p119
      %p121 = scmp.ne.s32.totalorder %s107, %s108
      %p122 = scmp.eq.s32.totalorder %s34, 1
      %p123 = por %p121, %p122
      %p125 = scmp.ne.s32.totalorder %s108, %s124
      %p126 = scmp.eq.s32.totalorder %s34, 0
      %p127 = por %p125, %p126
      %s128 = ssub.s32 %s35, %s47
      %s129 = ssub.s32 %s36, %s43
      %s130 = sor.u32 %s128, %s129
      %p131 = scmp.eq.s32.totalorder %s130, 0
      %s133 = sadd.s32 %s132, 1
      %s134 = scalar_select %p131, %s132, %s133
      %p137 = pneg %p131
      %p138 = scmp.eq.s32.totalorder %s28, 1
      %p139 = por %p137, %p138
      %p140 = scmp.ne.s32.totalorder %s132, %s135
      %p141 = scmp.eq.s32.totalorder %s28, 0
      %p142 = por %p140, %p141
      %p143 = scmp.ne.s32.totalorder %s132, %s135
      %p144 = scmp.eq.s32.totalorder %s33, 1
      %p145 = por %p143, %p144
      %p146 = scmp.ne.s32.totalorder %s135, %s136
      %p147 = scmp.eq.s32.totalorder %s33, 0
      %p148 = por %p146, %p147
      %p149 = scmp.ne.s32.totalorder %s135, %s136
      %p150 = scmp.eq.s32.totalorder %s34, 1
      %p151 = por %p149, %p150
      %p153 = scmp.ne.s32.totalorder %s136, %s152
      %p154 = scmp.eq.s32.totalorder %s34, 0
      %p155 = por %p153, %p154
      %s156 = ssub.s32 %s35, %s47
      %s157 = ssub.s32 %s36, %s43
      %s158 = sor.u32 %s156, %s157
      %p159 = scmp.eq.s32.totalorder %s158, 0
      %s161 = sadd.s32 %s160, 1
      %s162 = scalar_select %p159, %s160, %s161
      %p165 = pneg %p159
      %p166 = scmp.eq.s32.totalorder %s28, 1
      %p167 = por %p165, %p166
      %p168 = scmp.ne.s32.totalorder %s160, %s163
      %p169 = scmp.eq.s32.totalorder %s28, 0
      %p170 = por %p168, %p169
      %p171 = scmp.ne.s32.totalorder %s160, %s163
      %p172 = scmp.eq.s32.totalorder %s33, 1
      %p173 = por %p171, %p172
      %p174 = scmp.ne.s32.totalorder %s163, %s164
      %p175 = scmp.eq.s32.totalorder %s33, 0
      %p176 = por %p174, %p175
      %p177 = scmp.ne.s32.totalorder %s163, %s164
      %p178 = scmp.eq.s32.totalorder %s34, 1
      %p179 = por %p177, %p178
      %p181 = scmp.ne.s32.totalorder %s164, %s180
      %p182 = scmp.eq.s32.totalorder %s34, 0
      %p183 = por %p181, %p182
      %p184 = scmp.le.s32.totalorder 1, %s28
      %p185 = scmp.lt.s32.totalorder %s28, 3
      %p186 = pnand %p184, %p185
      %p187 = pneg %p186
      // Predicated region
      $region9: #{tpu_custom_call.1} parent=5 // pred_check
        _
      $region10: #{tpu_custom_call.1} parent=5 // pred_check_branch
        %189 = sbr.rel (%p186) target = $region12
      $region11: #{tpu_custom_call.1} parent=5 // pred_region
        %s190 = ssub.s32 %s28, 1
      $region12: #{tpu_custom_call.1} parent=5 // pred_fallthru
        _
      %p191 = scmp.lt.s32.totalorder %s28, 2
      // Predicated region
      $region13: #{tpu_custom_call.1} parent=5 // pred_check
        %p192 = pneg %p191
      $region14: #{tpu_custom_call.1} parent=5 // pred_check_branch
        %194 = sbr.rel (%p192) target = $region16
      $region15: #{tpu_custom_call.1} parent=5 // pred_region
        // Predicated region
        $region17: #{tpu_custom_call.1} parent=15 // pred_check
          %p195 = pneg %p62
        $region18: #{tpu_custom_call.1} parent=15 // pred_check_branch
          %197 = sbr.rel (%p195) target = $region20
        $region19: #{tpu_custom_call.1} parent=15 // pred_region
          %s198 = sand.u32 %s52, 1
          %s199 = scalar_lea.sflag [#allocation5], %s198
          %s200 = sand.u32 %s52, 1
          %s201 = smul.addr %s200, 8
          %s202 = scalar_lea.vmem [#allocation4], %s201
          %s204 = ssub.s32 128, 128
          %205 = vsyncadd %s199, %s204
          %s206 = sadd.s32 %s36, %s35
          %s207 = smul.addr %s206, 128
          %s208 = scalar_lea.hbm %s1, %s207
          %s210 = sshll.u32 %s202, 4
          %s211 = int_to_ptr.vmem [resolvable:$true] %s210
          %213 = dma.hbm_to_vmem [thread:$0]  %s208, 128, %s211, %s199
        $region20: #{tpu_custom_call.1} parent=15 // pred_fallthru
          _
        // Predicated region
        $region21: #{tpu_custom_call.1} parent=15 // pred_check
          %p214 = pneg %p88
        $region22: #{tpu_custom_call.1} parent=15 // pred_check_branch
          %216 = sbr.rel (%p214) target = $region24
        $region23: #{tpu_custom_call.1} parent=15 // pred_region
          %s217 = sand.u32 %s28, 1
          %s218 = scalar_lea.sflag [#allocation8], %s217
          %s219 = sand.u32 %s78, 1
          %s220 = smul.addr %s219, 8
          %s221 = scalar_lea.vmem [#allocation7], %s220
          %s223 = ssub.s32 128, 128
          %224 = vsyncadd %s218, %s223
          %s225 = smul.addr %s35, 128
          %s226 = scalar_lea.hbm %s2, %s225
          %s228 = sshll.u32 %s221, 4
          %s229 = int_to_ptr.vmem [resolvable:$true] %s228
          %231 = dma.hbm_to_vmem [thread:$0]  %s226, 128, %s229, %s218
        $region24: #{tpu_custom_call.1} parent=15 // pred_fallthru
          _
        // Predicated region
        $region25: #{tpu_custom_call.1} parent=15 // pred_check
          %p232 = pneg %p114
        $region26: #{tpu_custom_call.1} parent=15 // pred_check_branch
          %234 = sbr.rel (%p232) target = $region28
        $region27: #{tpu_custom_call.1} parent=15 // pred_region
          %s235 = sand.u32 %s28, 1
          %s236 = scalar_lea.sflag [#allocation8], %s235
          %s237 = sand.u32 %s104, 1
          %s238 = smul.addr %s237, 8
          %s239 = scalar_lea.vmem [#allocation9], %s238
          %s241 = ssub.s32 128, 128
          %242 = vsyncadd %s236, %s241
          %s243 = smul.addr %s35, 128
          %s244 = scalar_lea.hbm %s3, %s243
          %s246 = sshll.u32 %s239, 4
          %s247 = int_to_ptr.vmem [resolvable:$true] %s246
          %249 = dma.hbm_to_vmem [thread:$0]  %s244, 128, %s247, %s236
        $region28: #{tpu_custom_call.1} parent=15 // pred_fallthru
          _
      $region16: #{tpu_custom_call.1} parent=5 // pred_fallthru
        _
      %p250 = scmp.le.s32.totalorder 1, %s28
      %p251 = scmp.lt.s32.totalorder %s28, 3
      %p252 = pnand %p250, %p251
      %p253 = pneg %p252
      // Predicated region
      $region29: #{tpu_custom_call.1} parent=5 // pred_check
        _
      $region30: #{tpu_custom_call.1} parent=5 // pred_check_branch
        %255 = sbr.rel (%p252) target = $region32
      $region31: #{tpu_custom_call.1} parent=5 // pred_region
        %s256 = ssub.s32 %s28, 1
        %s257 = sand.u32 %s55, 1
        %s258 = scalar_lea.sflag [#allocation5], %s257
        %s259 = sand.u32 %s55, 1
        %s260 = smul.addr %s259, 8
        %s261 = scalar_lea.vmem [#allocation4], %s260
        // Predicated region
        $region33: #{tpu_custom_call.1} parent=31 // pred_check
          %p262 = pneg %p68
        $region34: #{tpu_custom_call.1} parent=31 // pred_check_branch
          %264 = sbr.rel (%p262) target = $region36
        $region35: #{tpu_custom_call.1} parent=31 // pred_region
          %265 = dma.done %s258, 128
        $region36: #{tpu_custom_call.1} parent=31 // pred_fallthru
          _
        %s266 = sand.u32 %s33, 1
        %s267 = scalar_lea.sflag [#allocation8], %s266
        %s268 = sand.u32 %s81, 1
        %s269 = smul.addr %s268, 8
        %s270 = scalar_lea.vmem [#allocation7], %s269
        // Predicated region
        $region37: #{tpu_custom_call.1} parent=31 // pred_check
          %p271 = pneg %p94
        $region38: #{tpu_custom_call.1} parent=31 // pred_check_branch
          %273 = sbr.rel (%p271) target = $region40
        $region39: #{tpu_custom_call.1} parent=31 // pred_region
          %274 = dma.done %s267, 128
        $region40: #{tpu_custom_call.1} parent=31 // pred_fallthru
          _
        %s275 = sand.u32 %s33, 1
        %s276 = scalar_lea.sflag [#allocation8], %s275
        %s277 = sand.u32 %s107, 1
        %s278 = smul.addr %s277, 8
        %s279 = scalar_lea.vmem [#allocation9], %s278
        // Predicated region
        $region41: #{tpu_custom_call.1} parent=31 // pred_check
          %p280 = pneg %p120
        $region42: #{tpu_custom_call.1} parent=31 // pred_check_branch
          %282 = sbr.rel (%p280) target = $region44
        $region43: #{tpu_custom_call.1} parent=31 // pred_region
          %283 = dma.done %s276, 128
        $region44: #{tpu_custom_call.1} parent=31 // pred_fallthru
          _
        %s284 = sand.u32 %s55, 1
        %s285 = scalar_lea.sflag [#allocation5], %s284
        %s286 = sand.u32 %s55, 1
        %s287 = smul.addr %s286, 8
        %s288 = scalar_lea.vmem [#allocation4], %s287
        %p289 = pneg %p68
        %p290 = pneg %p65
        %s291 = sand.u32 %s33, 1
        %s292 = scalar_lea.sflag [#allocation8], %s291
        %s293 = sand.u32 %s81, 1
        %s294 = smul.addr %s293, 8
        %s295 = scalar_lea.vmem [#allocation7], %s294
        %p296 = pneg %p94
        %p297 = pneg %p91
        %s298 = sand.u32 %s33, 1
        %s299 = scalar_lea.sflag [#allocation8], %s298
        %s300 = sand.u32 %s107, 1
        %s301 = smul.addr %s300, 8
        %s302 = scalar_lea.vmem [#allocation9], %s301
        %p303 = pneg %p120
        %p304 = pneg %p117
        %p305 = pneg %p148
        %p306 = pneg %p145
        %s307 = sand.u32 %s135, 1
        %s308 = scalar_lea.sflag [#allocation6], %s307
        %s309 = sand.u32 %s135, 1
        %s310 = smul.addr %s309, 8
        %s311 = scalar_lea.vmem [#allocation10], %s310
        %p312 = pneg %p176
        %p313 = pneg %p173
        %s314 = sand.u32 %s163, 1
        %s315 = scalar_lea.sflag [#allocation12], %s314
        %s316 = sand.u32 %s163, 1
        %s317 = smul.addr %s316, 8
        %s318 = scalar_lea.vmem [#allocation11], %s317
        %v319 = vld [vmem:[%s261] sm:$0xff]
        %v320 = vld [vmem:[%s270] sm:$0xff]
        %v321 = vld [vmem:[%s279] sm:$0xff]
        %v322 = vmul.f32 %v319, 0.25
        %vm323 = vcmask 130048
        %v325 = vsel %vm323, %v322, 0
        %v328 = vsel %vm323, %v320, 0
        %330 = vmatprep.subr.mxu0 0.0
        %331 = vmatpush1.xpose.msra.mxu0 %v328
        %332 = vmatprep.subr.mxu0 0.0
        %333 = vmatpush1.xpose.msra.mxu0 0.0
        %334 = vmatprep.subr.mxu0 0.0
        %335 = vmatpush1.xpose.msra.mxu0 0.0
        %336 = vmatprep.subr.mxu0 0.0
        %337 = vmatpush1.xpose.msra.mxu0 0.0
        %338 = vmatprep.subr.mxu0 0.0
        %339 = vmatpush1.xpose.msra.mxu0 0.0
        %340 = vmatprep.subr.mxu0 0.0
        %341 = vmatpush1.xpose.msra.mxu0 0.0
        %342 = vmatprep.subr.mxu0 0.0
        %343 = vmatpush1.xpose.msra.mxu0 0.0
        %344 = vmatprep.subr.mxu0 0.0
        %345 = vmatpush1.xpose.msra.mxu0 0.0
        %346 = vmatprep.subr.mxu0 0.0
        %347 = vmatpush1.xpose.msra.mxu0 0.0
        %348 = vmatprep.subr.mxu0 0.0
        %349 = vmatpush1.xpose.msra.mxu0 0.0
        %350 = vmatprep.subr.mxu0 0.0
        %351 = vmatpush1.xpose.msra.mxu0 0.0
        %352 = vmatprep.subr.mxu0 0.0
        %353 = vmatpush1.xpose.msra.mxu0 0.0
        %354 = vmatprep.subr.mxu0 0.0
        %355 = vmatpush1.xpose.msra.mxu0 0.0
        %356 = vmatprep.subr.mxu0 0.0
        %357 = vmatpush1.xpose.msra.mxu0 0.0
        %358 = vmatprep.subr.mxu0 0.0
        %359 = vmatpush1.xpose.msra.mxu0 0.0
        %360 = vmatprep.subr.mxu0 0.0
        %361 = vmatpush1.xpose.msra.mxu0 0.0
        %362 = vmatprep.subr.mxu0 0.0
        %363 = vmatpush1.xpose.msra.mxu0 0.0
        %364 = vmatprep.subr.mxu0 0.0
        %365 = vmatpush1.xpose.msra.mxu0 0.0
        %366 = vmatprep.subr.mxu0 0.0
        %367 = vmatpush1.xpose.msra.mxu0 0.0
        %368 = vmatprep.subr.mxu0 0.0
        %369 = vmatpush1.xpose.msra.mxu0 0.0
        %370 = vmatprep.subr.mxu0 0.0
        %371 = vmatpush1.xpose.msra.mxu0 0.0
        %372 = vmatprep.subr.mxu0 0.0
        %373 = vmatpush1.xpose.msra.mxu0 0.0
        %374 = vmatprep.subr.mxu0 0.0
        %375 = vmatpush1.xpose.msra.mxu0 0.0
        %376 = vmatprep.subr.mxu0 0.0
        %377 = vmatpush1.xpose.msra.mxu0 0.0
        %378 = vmatprep.subr.mxu0 0.0
        %379 = vmatpush1.xpose.msra.mxu0 0.0
        %380 = vmatprep.subr.mxu0 0.0
        %381 = vmatpush1.xpose.msra.mxu0 0.0
        %382 = vmatprep.subr.mxu0 0.0
        %383 = vmatpush1.xpose.msra.mxu0 0.0
        %384 = vmatprep.subr.mxu0 0.0
        %385 = vmatpush1.xpose.msra.mxu0 0.0
        %386 = vmatprep.subr.mxu0 0.0
        %387 = vmatpush1.xpose.msra.mxu0 0.0
        %388 = vmatprep.subr.mxu0 0.0
        %389 = vmatpush1.xpose.msra.mxu0 0.0
        %390 = vmatprep.subr.mxu0 0.0
        %391 = vmatpush1.xpose.msra.mxu0 0.0
        %392 = vmatprep.subr.mxu0 0.0
        %393 = vmatpush1.xpose.msra.mxu0 0.0
        %394 = vmatprep.mubr.f32.mxu0 0.0
        %395 = vmatmul.mubr.f32.gmra.mrb[0].mxu0 %v325
        %v396 = vpop.f32.mrb[0].mxu0
        %v397 = vadd.f32 0.0, %v396
        %v398 = vpop.f32.mrb[0].mxu0
        %399 = vdwg.mxu0
        %v400 = vlaneseq
        %v401 = vand.u32 %v400, 127
        %s402 = sld [smem:[#allocation3 + %s37]]
        %v403 = vstv %s402
        %vm404 = vcmp.lt.s32.totalorder %v401, %v403
        %v405 = vsel %vm404, %v397, -1000000.0
        %vm406 = vcmask 64512
        %v407 = vsel %vm406, %v405, -inf
        %408 = vmax.xlane.f32.xlu0 %v407
        %v409 = vpop.xlane.xlu0 %408
        %v410 = vsub.f32 %v405, %v409
        %v411 = vmul.f32 %v410, 1.442695
        %v412 = vpow.pop %v411
        %v413 = vsel %vm406, %v412, 0.0
        %414 = vadd.xlane.f32.xlu0 %v413
        %v415 = vpop.xlane.xlu0 %414
        %v416 = vrcp.pop %v415
        %v417 = vmul.f32 %v412, %v416
        %v419 = vsel %vm406, %v417, 0
        %421 = vmatprep.subr.mxu0 0.0
        %422 = vmatpush1.msra.mxu0 %v321
        %423 = vmatprep.subr.mxu0 0.0
        %424 = vmatpush1.msra.mxu0 0.0
        %425 = vmatprep.subr.mxu0 0.0
        %426 = vmatpush1.msra.mxu0 0.0
        %427 = vmatprep.subr.mxu0 0.0
        %428 = vmatpush1.msra.mxu0 0.0
        %429 = vmatprep.subr.mxu0 0.0
        %430 = vmatpush1.msra.mxu0 0.0
        %431 = vmatprep.subr.mxu0 0.0
        %432 = vmatpush1.msra.mxu0 0.0
        %433 = vmatprep.subr.mxu0 0.0
        %434 = vmatpush1.msra.mxu0 0.0
        %435 = vmatprep.subr.mxu0 0.0
        %436 = vmatpush1.msra.mxu0 0.0
        %437 = vmatprep.subr.mxu0 0.0
        %438 = vmatpush1.msra.mxu0 0.0
        %439 = vmatprep.subr.mxu0 0.0
        %440 = vmatpush1.msra.mxu0 0.0
        %441 = vmatprep.subr.mxu0 0.0
        %442 = vmatpush1.msra.mxu0 0.0
        %443 = vmatprep.subr.mxu0 0.0
        %444 = vmatpush1.msra.mxu0 0.0
        %445 = vmatprep.subr.mxu0 0.0
        %446 = vmatpush1.msra.mxu0 0.0
        %447 = vmatprep.subr.mxu0 0.0
        %448 = vmatpush1.msra.mxu0 0.0
        %449 = vmatprep.subr.mxu0 0.0
        %450 = vmatpush1.msra.mxu0 0.0
        %451 = vmatprep.subr.mxu0 0.0
        %452 = vmatpush1.msra.mxu0 0.0
        %453 = vmatprep.subr.mxu0 0.0
        %454 = vmatpush1.msra.mxu0 0.0
        %455 = vmatprep.subr.mxu0 0.0
        %456 = vmatpush1.msra.mxu0 0.0
        %457 = vmatprep.subr.mxu0 0.0
        %458 = vmatpush1.msra.mxu0 0.0
        %459 = vmatprep.subr.mxu0 0.0
        %460 = vmatpush1.msra.mxu0 0.0
        %461 = vmatprep.subr.mxu0 0.0
        %462 = vmatpush1.msra.mxu0 0.0
        %463 = vmatprep.subr.mxu0 0.0
        %464 = vmatpush1.msra.mxu0 0.0
        %465 = vmatprep.subr.mxu0 0.0
        %466 = vmatpush1.msra.mxu0 0.0
        %467 = vmatprep.subr.mxu0 0.0
        %468 = vmatpush1.msra.mxu0 0.0
        %469 = vmatprep.subr.mxu0 0.0
        %470 = vmatpush1.msra.mxu0 0.0
        %471 = vmatprep.subr.mxu0 0.0
        %472 = vmatpush1.msra.mxu0 0.0
        %473 = vmatprep.subr.mxu0 0.0
        %474 = vmatpush1.msra.mxu0 0.0
        %475 = vmatprep.subr.mxu0 0.0
        %476 = vmatpush1.msra.mxu0 0.0
        %477 = vmatprep.subr.mxu0 0.0
        %478 = vmatpush1.msra.mxu0 0.0
        %479 = vmatprep.subr.mxu0 0.0
        %480 = vmatpush1.msra.mxu0 0.0
        %481 = vmatprep.subr.mxu0 0.0
        %482 = vmatpush1.msra.mxu0 0.0
        %483 = vmatprep.subr.mxu0 0.0
        %484 = vmatpush1.msra.mxu0 0.0
        %485 = vmatprep.mubr.f32.mxu0 0.0
        %486 = vmatmul.mubr.f32.gmra.mrb[0].mxu0 %v419
        %v487 = vpop.f32.mrb[0].mxu0
        %v488 = vadd.f32 0.0, %v487
        %v489 = vpop.f32.mrb[0].mxu0
        %490 = vdwg.mxu0
        %491 = vst.msk [vmem:[%s311] sm:$0xff] %vm323, %v488
        %492 = vst.msk [vmem:[%s318] sm:$0xff] %vm406, %v417
        %s493 = sand.u32 %s135, 1
        %s494 = scalar_lea.sflag [#allocation6], %s493
        %s495 = sand.u32 %s135, 1
        %s496 = smul.addr %s495, 8
        %s497 = scalar_lea.vmem [#allocation10], %s496
        %s498 = sand.u32 %s163, 1
        %s499 = scalar_lea.sflag [#allocation12], %s498
        %s500 = sand.u32 %s163, 1
        %s501 = smul.addr %s500, 8
        %s502 = scalar_lea.vmem [#allocation11], %s501
        // Predicated region
        $region45: #{tpu_custom_call.1} parent=31 // pred_check
          %p503 = pneg %p145
        $region46: #{tpu_custom_call.1} parent=31 // pred_check_branch
          %505 = sbr.rel (%p503) target = $region48
        $region47: #{tpu_custom_call.1} parent=31 // pred_region
          %s507 = ssub.s32 128, 128
          %508 = vsyncadd %s494, %s507
          %s509 = sadd.s32 %s38, %s37
          %s510 = smul.addr %s509, 128
          %s511 = scalar_lea.hbm %s4, %s510
          %s513 = sshll.u32 %s497, 4
          %s514 = int_to_ptr.vmem [resolvable:$true] %s513
          %516 = dma.vmem_to_hbm [thread:$0]  %s514, 128, %s511, %s494
        $region48: #{tpu_custom_call.1} parent=31 // pred_fallthru
          _
        // Predicated region
        $region49: #{tpu_custom_call.1} parent=31 // pred_check
          %p517 = pneg %p173
        $region50: #{tpu_custom_call.1} parent=31 // pred_check_branch
          %519 = sbr.rel (%p517) target = $region52
        $region51: #{tpu_custom_call.1} parent=31 // pred_region
          %s521 = ssub.s32 128, 128
          %522 = vsyncadd %s499, %s521
          %s523 = sadd.s32 %s38, %s37
          %s524 = smul.addr %s523, 128
          %s525 = scalar_lea.hbm %s5, %s524
          %s527 = sshll.u32 %s502, 4
          %s528 = int_to_ptr.vmem [resolvable:$true] %s527
          %530 = dma.vmem_to_hbm [thread:$0]  %s528, 128, %s525, %s499
        $region52: #{tpu_custom_call.1} parent=31 // pred_fallthru
          _
      $region32: #{tpu_custom_call.1} parent=5 // pred_fallthru
        _
      %p531 = scmp.le.s32.totalorder 2, %s28
      // Predicated region
      $region53: #{tpu_custom_call.1} parent=5 // pred_check
        %p532 = pneg %p531
      $region54: #{tpu_custom_call.1} parent=5 // pred_check_branch
        %534 = sbr.rel (%p532) target = $region56
      $region55: #{tpu_custom_call.1} parent=5 // pred_region
        %s535 = ssub.s32 %s28, 2
        // Predicated region
        $region57: #{tpu_custom_call.1} parent=55 // pred_check
          %p536 = pneg %p151
        $region58: #{tpu_custom_call.1} parent=55 // pred_check_branch
          %538 = sbr.rel (%p536) target = $region60
        $region59: #{tpu_custom_call.1} parent=55 // pred_region
          %s539 = sand.u32 %s136, 1
          %s540 = scalar_lea.sflag [#allocation6], %s539
          %s541 = sand.u32 %s136, 1
          %s542 = smul.addr %s541, 8
          %s543 = scalar_lea.vmem [#allocation10], %s542
          %544 = dma.done %s540, 128
        $region60: #{tpu_custom_call.1} parent=55 // pred_fallthru
          _
        // Predicated region
        $region61: #{tpu_custom_call.1} parent=55 // pred_check
          %p545 = pneg %p179
        $region62: #{tpu_custom_call.1} parent=55 // pred_check_branch
          %547 = sbr.rel (%p545) target = $region64
        $region63: #{tpu_custom_call.1} parent=55 // pred_region
          %s548 = sand.u32 %s164, 1
          %s549 = scalar_lea.sflag [#allocation12], %s548
          %s550 = sand.u32 %s164, 1
          %s551 = smul.addr %s550, 8
          %s552 = scalar_lea.vmem [#allocation11], %s551
          %553 = dma.done %s549, 128
        $region64: #{tpu_custom_call.1} parent=55 // pred_fallthru
          _
      $region56: #{tpu_custom_call.1} parent=5 // pred_fallthru
        _
    $region6: #{tpu_custom_call.1} parent=1 // loop_footer
      %s32 = sadd.s32 1, %s28
    $region7: #{tpu_custom_call.1} parent=1 // loop_footer_branch
      %27 = sbr.rel target = $region3
    $region8: #{tpu_custom_call.1} parent=1 // loop_exit
      _
    %554 = vsyncpa [#allocation5], 1
    %s555 = scalar_lea.sflag [#allocation5], 1
    %556 = vsyncpa %s555, 1
    %557 = vsyncpa [#allocation8], 1
    %s558 = scalar_lea.sflag [#allocation8], 1
    %559 = vsyncpa %s558, 1
    %560 = vsyncpa [#allocation6], 1
    %s561 = scalar_lea.sflag [#allocation6], 1
    %562 = vsyncpa %s561, 1
    %563 = vsyncpa [#allocation12], 1
    %s564 = scalar_lea.sflag [#allocation12], 1
    %565 = vsyncpa %s564, 1

</llo_original>
